<compile_context>
chip_gen: v5e
topology: v5e:2x2
jax: 0.10.0
libtpu: 0.0.40
codegen_flags: <defaults>
</compile_context>

<pallas_src>
import functools

import jax
import jax.numpy as jnp
from jax.experimental import pallas as pl
from jax.experimental.pallas import tpu as pltpu

HID = 128      # hidden width of the fc trunk
OBS = 8        # observation dim (LunarLander: 8)
N_ACT = 4      # number of actions
HEAD_W = 8     # fused head width: lanes 0..3 actor probs, lane 4 critic value


def _round_up(x, m):
    return ((x + m - 1) // m) * m


def actor_critic_kernel(x_ref, w1_ref, b1_ref, w2_ref, b2_ref,
                        wh_ref, bh_ref, out_ref):
    x = x_ref[...].astype(jnp.float32)                               # (TB, 8)

    # fc layer 1: Linear(8, 128) + ReLU   (K=8; kept f32, tiny)
    h1 = jnp.dot(x, w1_ref[...], preferred_element_type=jnp.float32)
    h1 = jnp.maximum(h1 + b1_ref[...], 0.0)                          # (TB, 128)

    # fc layer 2: Linear(128, 128) + ReLU   (bf16 operands, f32 accumulate)
    h2 = jnp.dot(h1.astype(jnp.bfloat16), w2_ref[...],
                 preferred_element_type=jnp.float32)
    h2 = jnp.maximum(h2 + b2_ref[...], 0.0)                          # (TB, 128)

    # fused heads: one (128, 8) matmul.
    #   lanes 0..3 -> actor logits, lane 4 -> critic value, lanes 5..7 -> pad
    heads = jnp.dot(h2.astype(jnp.bfloat16), wh_ref[...],
                    preferred_element_type=jnp.float32)
    heads = heads + bh_ref[...]                                      # (TB, 8)

    col = jax.lax.broadcasted_iota(jnp.int32, heads.shape, 1)
    actor_mask = col < N_ACT
    value_mask = col == N_ACT

    # masked, max-stabilized softmax over the first N_ACT lanes only.
    logits = jnp.where(actor_mask, heads, -jnp.inf)
    m = jnp.max(logits, axis=-1, keepdims=True)
    e = jnp.exp(logits - m)                       # zeros outside actor lanes
    s = jnp.sum(e, axis=-1, keepdims=True)
    probs = e / s                                 # exact: rows sum to 1 (f32)

    # lane-dense combined output: probs | value | zeros
    out = probs + jnp.where(value_mask, heads, 0.0)
    out_ref[...] = out.astype(out_ref.dtype)


@functools.partial(jax.jit, static_argnames=("tb",))
def actor_critic_forward(state, packed_params, tb=1024):
    """state: (B, 8) float32.  Returns (probs (B, 4), value (B,))."""
    B = state.shape[0]
    w1, b1, w2, b2, wh, bh = packed_params

    # batch tile: multiple of 8 (sublane).  Cap so large batches produce at
    # least 2 grid steps (lets the "parallel" axis shard over v7x's 2 TCs).
    TB = min(tb, _round_up(B, 8), _round_up(pl.cdiv(B, 2), 8))
    n_steps = pl.cdiv(B, TB)          # ragged last tile handled by Pallas

    const = lambda a: pl.BlockSpec(a.shape, lambda i: (0, 0))

    weight_bytes = 4 * (w1.size + b1.size + b2.size + bh.size) \
                 + 2 * (w2.size + wh.size)                      # bf16 weights
    cost = pl.CostEstimate(
        flops=2 * B * (OBS * HID + HID * HID + HID * HEAD_W),
        transcendentals=HEAD_W * B,                  # exp over 8 lanes / row
        bytes_accessed=4 * B * OBS + weight_bytes + 4 * B * HEAD_W,
    )

    out = pl.pallas_call(
        actor_critic_kernel,
        out_shape=jax.ShapeDtypeStruct((B, HEAD_W), jnp.float32),
        grid=(n_steps,),
        in_specs=[
            pl.BlockSpec((TB, OBS), lambda i: (i, 0)),   # x: tiled over batch
            const(w1), const(b1),                        # weights resident in VMEM
            const(w2), const(b2),
            const(wh), const(bh),
        ],
        out_specs=pl.BlockSpec((TB, HEAD_W), lambda i: (i, 0)),
        compiler_params=pltpu.CompilerParams(
            dimension_semantics=("parallel",),           # megacore on v7x
        ),
        cost_estimate=cost,
    )(state, w1, b1, w2, b2, wh, bh)

    probs = out[:, :N_ACT]
    value = out[:, N_ACT]
    return probs, value


def init_params(key):
    """Deterministic init mimicking nn.Linear default (uniform +/- 1/sqrt(fan_in)).
    Weights stored as (in_features, out_features)."""
    def linear(key, fan_in, fan_out):
        kw, kb = jax.random.split(key)
        bound = 1.0 / jnp.sqrt(fan_in)
        w = jax.random.uniform(kw, (fan_in, fan_out), jnp.float32, -bound, bound)
        b = jax.random.uniform(kb, (1, fan_out), jnp.float32, -bound, bound)
        return w, b

    k1, k2, ka, kc = jax.random.split(key, 4)
    w1, b1 = linear(k1, OBS, HID)     # fc[0]: Linear(8, 128)
    w2, b2 = linear(k2, HID, HID)     # fc[2]: Linear(128, 128)
    wa, ba = linear(ka, HID, N_ACT)   # actor : Linear(128, 4)
    wc, bc = linear(kc, HID, 1)       # critic: Linear(128, 1)
    return (w1, b1, w2, b2, wa, ba, wc, bc)


def pack_params(params):
    """Fuse actor/critic heads into one (128, 8) weight + (1, 8) bias.
    w2 and the fused head weight are pre-cast to bf16 for single-pass MXU."""
    w1, b1, w2, b2, wa, ba, wc, bc = params
    wh = jnp.zeros((HID, HEAD_W), jnp.float32)
    wh = wh.at[:, :N_ACT].set(wa)
    wh = wh.at[:, N_ACT:N_ACT + 1].set(wc)
    bh = jnp.zeros((1, HEAD_W), jnp.float32)
    bh = bh.at[:, :N_ACT].set(ba)
    bh = bh.at[:, N_ACT:N_ACT + 1].set(bc)
    return (w1, b1, w2.astype(jnp.bfloat16), b2, wh.astype(jnp.bfloat16), bh)


def reference_forward(state, params):
    """Pure-JAX f32 reference matching the PyTorch module."""
    w1, b1, w2, b2, wa, ba, wc, bc = params
    h1 = jnp.maximum(state @ w1 + b1, 0.0)
    h2 = jnp.maximum(h1 @ w2 + b2, 0.0)
    value = (h2 @ wc + bc)[:, 0]
    probs = jax.nn.softmax(h2 @ wa + ba, axis=-1)
    return probs, value


# TODO(synk): learn() (Adam step, smooth_l1_loss) and sample() (Categorical
# sampling) are training/host-side logic, not part of the forward kernel.

if __name__ == "__main__":
    key = jax.random.PRNGKey(0)
    kp, kx = jax.random.split(key)

    params = init_params(kp)
    packed = pack_params(params)
    state = jax.random.normal(kx, (2, OBS), jnp.float32)   # batch=2, obs_dim=8

    probs, value = actor_critic_forward(state, packed)
    jax.block_until_ready((probs, value))

    # sanity: shapes, softmax rows sum to 1 (exact reciprocal -> f32 rounding)
    assert probs.shape == (2, N_ACT) and value.shape == (2,)
    row_sums = jnp.sum(probs, axis=-1)
    assert bool(jnp.all(jnp.abs(row_sums - 1.0) < 1e-5))

    # matches pure-f32 reference within bf16-matmul tolerance
    ref_probs, ref_value = reference_forward(state, params)
    assert bool(jnp.all(jnp.abs(probs - ref_probs) < 2e-2))
    assert bool(jnp.all(jnp.abs(value - ref_value) < 2e-2))

    print("KERNEL_OK")
</pallas_src>

<mosaic_0001>
module attributes {stable_mosaic.version = 11 : i64} {
  func.func @actor_critic_kernel(%arg0: i32, %arg1: memref<8x8xf32, #tpu.memory_space<vmem>>, %arg2: memref<8x128xf32, #tpu.memory_space<vmem>>, %arg3: memref<1x128xf32, #tpu.memory_space<vmem>>, %arg4: memref<128x128xbf16, #tpu.memory_space<vmem>>, %arg5: memref<1x128xf32, #tpu.memory_space<vmem>>, %arg6: memref<128x8xbf16, #tpu.memory_space<vmem>>, %arg7: memref<1x8xf32, #tpu.memory_space<vmem>>, %arg8: memref<8x8xf32, #tpu.memory_space<vmem>>) attributes {dimension_semantics = [#tpu.dimension_semantics<parallel>], iteration_bounds = array<i64: 1>, scalar_prefetch = 0 : i64, scratch_operands = 0 : i64, tpu.core_type = #tpu.core_type<tc>, window_params = [{transform_indices = @transform_0, window_bounds = array<i64: 8, 8>}, {pipeline_mode = #tpu.pipeline_mode<synchronous>, transform_indices = @transform_1, window_bounds = array<i64: 8, 128>}, {pipeline_mode = #tpu.pipeline_mode<synchronous>, transform_indices = @transform_2, window_bounds = array<i64: 1, 128>}, {pipeline_mode = #tpu.pipeline_mode<synchronous>, transform_indices = @transform_3, window_bounds = array<i64: 128, 128>}, {pipeline_mode = #tpu.pipeline_mode<synchronous>, transform_indices = @transform_4, window_bounds = array<i64: 1, 128>}, {pipeline_mode = #tpu.pipeline_mode<synchronous>, transform_indices = @transform_5, window_bounds = array<i64: 128, 8>}, {pipeline_mode = #tpu.pipeline_mode<synchronous>, transform_indices = @transform_6, window_bounds = array<i64: 1, 8>}, {transform_indices = @transform_7, window_bounds = array<i64: 8, 8>}]} {
    %c0 = arith.constant 0 : index
    %c0_0 = arith.constant 0 : index
    %0 = vector.load %arg1[%c0, %c0_0] : memref<8x8xf32, #tpu.memory_space<vmem>>, vector<8x8xf32>
    %c0_1 = arith.constant 0 : index
    %c0_2 = arith.constant 0 : index
    %1 = vector.load %arg2[%c0_1, %c0_2] : memref<8x128xf32, #tpu.memory_space<vmem>>, vector<8x128xf32>
    %cst = arith.constant dense<0.000000e+00> : vector<8x128xf32>
    %2 = tpu.matmul %0, %1, %cst {dimension_numbers = #tpu.dot_dimension_numbers<[1], [0], [0], [1], [0, 0, 1, 1], [], []>} : vector<8x8xf32>, vector<8x128xf32>, vector<8x128xf32> -> vector<8x128xf32>
    %c0_3 = arith.constant 0 : index
    %c0_4 = arith.constant 0 : index
    %3 = vector.load %arg3[%c0_3, %c0_4] : memref<1x128xf32, #tpu.memory_space<vmem>>, vector<1x128xf32>
    %4 = vector.broadcast %3 : vector<1x128xf32> to vector<8x128xf32>
    %5 = arith.addf %2, %4 : vector<8x128xf32>
    %cst_5 = arith.constant 0.000000e+00 : f32
    %6 = vector.broadcast %cst_5 : f32 to vector<8x128xf32>
    %7 = arith.maximumf %5, %6 : vector<8x128xf32>
    %8 = arith.truncf %7 : vector<8x128xf32> to vector<8x128xbf16>
    %c0_6 = arith.constant 0 : index
    %c0_7 = arith.constant 0 : index
    %9 = vector.load %arg4[%c0_6, %c0_7] : memref<128x128xbf16, #tpu.memory_space<vmem>>, vector<128x128xbf16>
    %cst_8 = arith.constant dense<0.000000e+00> : vector<8x128xf32>
    %10 = tpu.matmul %8, %9, %cst_8 {dimension_numbers = #tpu.dot_dimension_numbers<[1], [0], [0], [1], [0, 0, 1, 1], [], []>} : vector<8x128xbf16>, vector<128x128xbf16>, vector<8x128xf32> -> vector<8x128xf32>
    %c0_9 = arith.constant 0 : index
    %c0_10 = arith.constant 0 : index
    %11 = vector.load %arg5[%c0_9, %c0_10] : memref<1x128xf32, #tpu.memory_space<vmem>>, vector<1x128xf32>
    %12 = vector.broadcast %11 : vector<1x128xf32> to vector<8x128xf32>
    %13 = arith.addf %10, %12 : vector<8x128xf32>
    %cst_11 = arith.constant 0.000000e+00 : f32
    %14 = vector.broadcast %cst_11 : f32 to vector<8x128xf32>
    %15 = arith.maximumf %13, %14 : vector<8x128xf32>
    %16 = arith.truncf %15 : vector<8x128xf32> to vector<8x128xbf16>
    %c0_12 = arith.constant 0 : index
    %c0_13 = arith.constant 0 : index
    %17 = vector.load %arg6[%c0_12, %c0_13] : memref<128x8xbf16, #tpu.memory_space<vmem>>, vector<128x8xbf16>
    %cst_14 = arith.constant dense<0.000000e+00> : vector<8x8xf32>
    %18 = tpu.matmul %16, %17, %cst_14 {dimension_numbers = #tpu.dot_dimension_numbers<[1], [0], [0], [1], [0, 0, 1, 1], [], []>} : vector<8x128xbf16>, vector<128x8xbf16>, vector<8x8xf32> -> vector<8x8xf32>
    %c0_15 = arith.constant 0 : index
    %c0_16 = arith.constant 0 : index
    %19 = vector.load %arg7[%c0_15, %c0_16] : memref<1x8xf32, #tpu.memory_space<vmem>>, vector<1x8xf32>
    %20 = vector.broadcast %19 : vector<1x8xf32> to vector<8x8xf32>
    %21 = arith.addf %18, %20 : vector<8x8xf32>
    %22 = tpu.iota {dimensions = array<i32: 1>} : vector<8x8xi32>
    %c4_i32 = arith.constant 4 : i32
    %23 = vector.broadcast %c4_i32 : i32 to vector<8x8xi32>
    %24 = arith.cmpi slt, %22, %23 : vector<8x8xi32>
    %c4_i32_17 = arith.constant 4 : i32
    %25 = vector.broadcast %c4_i32_17 : i32 to vector<8x8xi32>
    %26 = arith.cmpi eq, %22, %25 : vector<8x8xi32>
    %cst_18 = arith.constant 0xFF800000 : f32
    %27 = vector.broadcast %cst_18 : f32 to vector<8x8xf32>
    %28 = arith.select %24, %21, %27 : vector<8x8xi1>, vector<8x8xf32>
    %cst_19 = arith.constant dense<0xFF800000> : vector<8xf32>
    %29 = vector.multi_reduction <maximumf>, %28, %cst_19 [1] : vector<8x8xf32> to vector<8xf32>
    %30 = vector.shape_cast %29 : vector<8xf32> to vector<8x1xf32>
    %31 = vector.broadcast %30 : vector<8x1xf32> to vector<8x8xf32>
    %32 = arith.subf %28, %31 : vector<8x8xf32>
    %33 = math.exp %32 : vector<8x8xf32>
    %cst_20 = arith.constant dense<0.000000e+00> : vector<8xf32>
    %34 = vector.multi_reduction <add>, %33, %cst_20 [1] : vector<8x8xf32> to vector<8xf32>
    %35 = vector.shape_cast %34 : vector<8xf32> to vector<8x1xf32>
    %36 = vector.broadcast %35 : vector<8x1xf32> to vector<8x8xf32>
    %37 = arith.divf %33, %36 : vector<8x8xf32>
    %cst_21 = arith.constant 0.000000e+00 : f32
    %38 = vector.broadcast %cst_21 : f32 to vector<8x8xf32>
    %39 = arith.select %26, %21, %38 : vector<8x8xi1>, vector<8x8xf32>
    %40 = arith.addf %37, %39 : vector<8x8xf32>
    %c0_22 = arith.constant 0 : index
    %c0_23 = arith.constant 0 : index
    %41 = vector.load %arg8[%c0_22, %c0_23] : memref<8x8xf32, #tpu.memory_space<vmem>>, vector<8x8xf32>
    tpu.vector_store %arg8[%c0_22, %c0_23], %40 {strides = array<i32>} : memref<8x8xf32, #tpu.memory_space<vmem>>, vector<8x8xf32>,
    return
  }
  func.func @transform_0(%arg0: i32) -> (i32, i32) {
    %c0_i32 = arith.constant 0 : i32
    %c0_i32_0 = arith.constant 0 : i32
    return %arg0, %c0_i32 : i32, i32
  }
  func.func @transform_1(%arg0: i32) -> (i32, i32) {
    %c0_i32 = arith.constant 0 : i32
    %c0_i32_0 = arith.constant 0 : i32
    %c0_i32_1 = arith.constant 0 : i32
    return %c0_i32, %c0_i32_0 : i32, i32
  }
  func.func @transform_2(%arg0: i32) -> (i32, i32) {
    %c0_i32 = arith.constant 0 : i32
    %c0_i32_0 = arith.constant 0 : i32
    %c0_i32_1 = arith.constant 0 : i32
    return %c0_i32, %c0_i32_0 : i32, i32
  }
  func.func @transform_3(%arg0: i32) -> (i32, i32) {
    %c0_i32 = arith.constant 0 : i32
    %c0_i32_0 = arith.constant 0 : i32
    %c0_i32_1 = arith.constant 0 : i32
    return %c0_i32, %c0_i32_0 : i32, i32
  }
  func.func @transform_4(%arg0: i32) -> (i32, i32) {
    %c0_i32 = arith.constant 0 : i32
    %c0_i32_0 = arith.constant 0 : i32
    %c0_i32_1 = arith.constant 0 : i32
    return %c0_i32, %c0_i32_0 : i32, i32
  }
  func.func @transform_5(%arg0: i32) -> (i32, i32) {
    %c0_i32 = arith.constant 0 : i32
    %c0_i32_0 = arith.constant 0 : i32
    %c0_i32_1 = arith.constant 0 : i32
    return %c0_i32, %c0_i32_0 : i32, i32
  }
  func.func @transform_6(%arg0: i32) -> (i32, i32) {
    %c0_i32 = arith.constant 0 : i32
    %c0_i32_0 = arith.constant 0 : i32
    %c0_i32_1 = arith.constant 0 : i32
    return %c0_i32, %c0_i32_0 : i32, i32
  }
  func.func @transform_7(%arg0: i32) -> (i32, i32) {
    %c0_i32 = arith.constant 0 : i32
    %c0_i32_0 = arith.constant 0 : i32
    return %arg0, %c0_i32 : i32, i32
  }
}

</mosaic_0001>

<llo_original>
// kernel: actor_critic_forward.1
$region0: #{actor_critic_forward.1}
  #allocation0 [shape = 'u32[]', space=smem, size = 0x4, offset = 0x4, fixed_abs, tag = 'smem constant byte address 0x4 - core index']
  #allocation1 [shape = 'u32[72,128]{1,0:T(1,128)}', space=vmem, size = 0x9000, scoped, tag = 'internal scratch']
  %s0 = inlined_call_operand.vmem [shape: f32[2,8], index: 0, kind: input, shape index: {}]
  %s1 = inlined_call_operand.hbm [shape: f32[8,128], index: 1, kind: input, shape index: {}]
  %s2 = inlined_call_operand.vmem [shape: f32[1,128], index: 2, kind: input, shape index: {}]
  %s3 = inlined_call_operand.vmem [shape: bf16[128,128], index: 3, kind: input, shape index: {}]
  %s4 = inlined_call_operand.vmem [shape: f32[1,128], index: 4, kind: input, shape index: {}]
  %s5 = inlined_call_operand.vmem [shape: bf16[128,8], index: 5, kind: input, shape index: {}]
  %s6 = inlined_call_operand.vmem [shape: f32[1,8], index: 6, kind: input, shape index: {}]
  %s7 = inlined_call_operand.vmem [shape: f32[2,8], index: 7, kind: output, shape index: {}]
  %s8 = sld [smem:[#allocation0]]
  $region72: #{actor_critic_forward.1} parent=0
    _
  %s10 = ssub.s32 1, %s8
  %s11 = scalar_select 0, %s10, %s8
  $region1: #{actor_critic_forward.1} parent=0
    #allocation2 [shape = 'u8[4096]{0}', space=vmem, size = 0x1000, scoped, tag = 'input window, operand 1, single buffered']
    #allocation3 [shape = 's32[1]{0}', space=sflag, size = 0x4, scoped, tag = 'scoped memory for actor_critic_forward.1']
    #allocation4 [shape = 'u8[4096]{0}', space=vmem, size = 0x1000, scoped, tag = 'output window, operand 0, single buffered']
    %12 = vsyncpa [#allocation3], 0
    // Predicated region
    $region2: #{actor_critic_forward.1} parent=1 // pred_check
      _
    $region3: #{actor_critic_forward.1} parent=1 // pred_check_branch
      %14 = sbr.rel (0) target = $region5
    $region4: #{actor_critic_forward.1} parent=1 // pred_region
      _
    $region5: #{actor_critic_forward.1} parent=1 // pred_fallthru
      _
    // Predicated region
    $region6: #{actor_critic_forward.1} parent=1 // pred_check
      _
    $region7: #{actor_critic_forward.1} parent=1 // pred_check_branch
      %16 = sbr.rel (0) target = $region9
    $region8: #{actor_critic_forward.1} parent=1 // pred_region
      %18 = vsyncadd [#allocation3], 0
      %s20 = sshll.u32 %s1, 4
      %s21 = int_to_ptr.hbm [resolvable:$true] %s20
      %s22 = sshll.u32 [#allocation2], 4
      %s23 = int_to_ptr.vmem [resolvable:$true] %s22
      %25 = dma.hbm_to_vmem [thread:$0]  %s21, 128, %s23, [#allocation3]
    $region9: #{actor_critic_forward.1} parent=1 // pred_fallthru
      _
    // Predicated region
    $region10: #{actor_critic_forward.1} parent=1 // pred_check
      _
    $region11: #{actor_critic_forward.1} parent=1 // pred_check_branch
      %27 = sbr.rel (0) target = $region13
    $region12: #{actor_critic_forward.1} parent=1 // pred_region
      _
    $region13: #{actor_critic_forward.1} parent=1 // pred_fallthru
      _
    // Predicated region
    $region14: #{actor_critic_forward.1} parent=1 // pred_check
      _
    $region15: #{actor_critic_forward.1} parent=1 // pred_check_branch
      %29 = sbr.rel (0) target = $region17
    $region16: #{actor_critic_forward.1} parent=1 // pred_region
      _
    $region17: #{actor_critic_forward.1} parent=1 // pred_fallthru
      _
    // Predicated region
    $region18: #{actor_critic_forward.1} parent=1 // pred_check
      _
    $region19: #{actor_critic_forward.1} parent=1 // pred_check_branch
      %31 = sbr.rel (0) target = $region21
    $region20: #{actor_critic_forward.1} parent=1 // pred_region
      _
    $region21: #{actor_critic_forward.1} parent=1 // pred_fallthru
      _
    // Predicated region
    $region22: #{actor_critic_forward.1} parent=1 // pred_check
      _
    $region23: #{actor_critic_forward.1} parent=1 // pred_check_branch
      %33 = sbr.rel (0) target = $region25
    $region24: #{actor_critic_forward.1} parent=1 // pred_region
      _
    $region25: #{actor_critic_forward.1} parent=1 // pred_fallthru
      _
    // Predicated region
    $region26: #{actor_critic_forward.1} parent=1 // pred_check
      _
    $region27: #{actor_critic_forward.1} parent=1 // pred_check_branch
      %35 = sbr.rel (0) target = $region29
    $region28: #{actor_critic_forward.1} parent=1 // pred_region
      _
    $region29: #{actor_critic_forward.1} parent=1 // pred_fallthru
      _
    // Predicated region
    $region30: #{actor_critic_forward.1} parent=1 // pred_check
      _
    $region31: #{actor_critic_forward.1} parent=1 // pred_check_branch
      %37 = sbr.rel (0) target = $region33
    $region32: #{actor_critic_forward.1} parent=1 // pred_region
      %39 = dma.done [#allocation3], 128
    $region33: #{actor_critic_forward.1} parent=1 // pred_fallthru
      _
    %v40 = vld [vmem:[%s0] sm:$0xff]
    %v41 = vld [vmem:[#allocation2] sm:$0xff]
    %v42 = vld [vmem:[%s2] sm:$0x1]
    %v44 = vperm.slane %v42, 0
    %vm46 = vcmask 64512
    %v48 = vsel %vm46, %v40, 0
    %50 = vmatpush.msra.mxu0 0.0
    %51 = vmatpush.msra.mxu0 0.0
    %52 = vmatpush.msra.mxu0 0.0
    %53 = vmatpush.msra.mxu0 0.0
    %54 = vmatpush.msra.mxu0 0.0
    %55 = vmatpush.msra.mxu0 0.0
    %56 = vmatpush.msra.mxu0 0.0
    %57 = vmatpush.msra.mxu0 0.0
    %58 = vmatpush.msra.mxu0 0.0
    %59 = vmatpush.msra.mxu0 0.0
    %60 = vmatpush.msra.mxu0 0.0
    %61 = vmatpush.msra.mxu0 0.0
    %62 = vmatpush.msra.mxu0 0.0
    %63 = vmatpush.msra.mxu0 0.0
    %64 = vmatpush.msra.mxu0 0.0
    %65 = vmatpush.msra.mxu0 %v41
    %66 = vmatmul.f32.gmra.mxu0 %v48
    %v67 = vpop.f32.mrf.mxu0
    %v68 = vadd.f32 %v44, %v67
    %69 = vdwg.mxu0
    %v70 = vmax.f32 %v68, 0.0
    %v71 = vpack.c.bf16 %v70, %v70
    %v72 = vld [vmem:[%s3] sm:$0xf]
    %v73 = vld [vmem:[%s3 + $0x4] sm:$0xf]
    %v74 = vld [vmem:[%s3 + $0x8] sm:$0xf]
    %v75 = vld [vmem:[%s3 + $0xc] sm:$0xf]
    %v76 = vld [vmem:[%s3 + $0x10] sm:$0xf]
    %v77 = vld [vmem:[%s3 + $0x14] sm:$0xf]
    %v78 = vld [vmem:[%s3 + $0x18] sm:$0xf]
    %v79 = vld [vmem:[%s3 + $0x1c] sm:$0xf]
    %v80 = vld [vmem:[%s3 + $0x20] sm:$0xf]
    %v81 = vld [vmem:[%s3 + $0x24] sm:$0xf]
    %v82 = vld [vmem:[%s3 + $0x28] sm:$0xf]
    %v83 = vld [vmem:[%s3 + $0x2c] sm:$0xf]
    %v84 = vld [vmem:[%s3 + $0x30] sm:$0xf]
    %v85 = vld [vmem:[%s3 + $0x34] sm:$0xf]
    %v86 = vld [vmem:[%s3 + $0x38] sm:$0xf]
    %v87 = vld [vmem:[%s3 + $0x3c] sm:$0xf]
    %v88 = vld [vmem:[%s4] sm:$0x1]
    %v90 = vperm.slane %v88, 0
    %v108 = vunpack.c.l.b16 %v72
    %v109 = vunpack.c.l.b16 %v73
    %v110 = vunpack.c.l.b16 %v74
    %v111 = vunpack.c.l.b16 %v75
    %v112 = vunpack.c.l.b16 %v76
    %v113 = vunpack.c.l.b16 %v77
    %v114 = vunpack.c.l.b16 %v78
    %v115 = vunpack.c.l.b16 %v79
    %v116 = vunpack.c.l.b16 %v80
    %v117 = vunpack.c.l.b16 %v81
    %v118 = vunpack.c.l.b16 %v82
    %v119 = vunpack.c.l.b16 %v83
    %v120 = vunpack.c.l.b16 %v84
    %v121 = vunpack.c.l.b16 %v85
    %v122 = vunpack.c.l.b16 %v86
    %v123 = vunpack.c.l.b16 %v87
    %v124 = vpack.c.b16 %v109, %v108
    %v125 = vpack.c.b16 %v111, %v110
    %v126 = vpack.c.b16 %v113, %v112
    %v127 = vpack.c.b16 %v115, %v114
    %v128 = vpack.c.b16 %v117, %v116
    %v129 = vpack.c.b16 %v119, %v118
    %v130 = vpack.c.b16 %v121, %v120
    %v131 = vpack.c.b16 %v123, %v122
    %140 = vmatpush.bf16.msra.mxu0 %v131
    %141 = vmatpush.bf16.msra.mxu0 %v130
    %142 = vmatpush.bf16.msra.mxu0 %v129
    %143 = vmatpush.bf16.msra.mxu0 %v128
    %144 = vmatpush.bf16.msra.mxu0 %v127
    %145 = vmatpush.bf16.msra.mxu0 %v126
    %146 = vmatpush.bf16.msra.mxu0 %v125
    %147 = vmatpush.bf16.msra.mxu0 %v124
    %148 = vmatmul.bf16.gmra.mxu0 %v71
    %v149 = vpop.f32.mrf.mxu0
    %v150 = vadd.f32 %v90, %v149
    %v151 = vpop.f32.mrf.mxu0
    %152 = vdwg.mxu0
    %v153 = vmax.f32 %v150, 0.0
    %v154 = vpack.c.bf16 %v153, %v153
    %v155 = vld [vmem:[%s5] sm:$0xf]
    %v156 = vld [vmem:[%s5 + $0x4] sm:$0xf]
    %v157 = vld [vmem:[%s5 + $0x8] sm:$0xf]
    %v158 = vld [vmem:[%s5 + $0xc] sm:$0xf]
    %v159 = vld [vmem:[%s5 + $0x10] sm:$0xf]
    %v160 = vld [vmem:[%s5 + $0x14] sm:$0xf]
    %v161 = vld [vmem:[%s5 + $0x18] sm:$0xf]
    %v162 = vld [vmem:[%s5 + $0x1c] sm:$0xf]
    %v163 = vld [vmem:[%s5 + $0x20] sm:$0xf]
    %v164 = vld [vmem:[%s5 + $0x24] sm:$0xf]
    %v165 = vld [vmem:[%s5 + $0x28] sm:$0xf]
    %v166 = vld [vmem:[%s5 + $0x2c] sm:$0xf]
    %v167 = vld [vmem:[%s5 + $0x30] sm:$0xf]
    %v168 = vld [vmem:[%s5 + $0x34] sm:$0xf]
    %v169 = vld [vmem:[%s5 + $0x38] sm:$0xf]
    %v170 = vld [vmem:[%s5 + $0x3c] sm:$0xf]
    %v171 = vld [vmem:[%s6] sm:$0x1]
    %v173 = vperm.slane %v171, 0
    %v191 = vunpack.c.l.b16 %v155
    %v192 = vunpack.c.l.b16 %v156
    %v193 = vunpack.c.l.b16 %v157
    %v194 = vunpack.c.l.b16 %v158
    %v195 = vunpack.c.l.b16 %v159
    %v196 = vunpack.c.l.b16 %v160
    %v197 = vunpack.c.l.b16 %v161
    %v198 = vunpack.c.l.b16 %v162
    %v199 = vunpack.c.l.b16 %v163
    %v200 = vunpack.c.l.b16 %v164
    %v201 = vunpack.c.l.b16 %v165
    %v202 = vunpack.c.l.b16 %v166
    %v203 = vunpack.c.l.b16 %v167
    %v204 = vunpack.c.l.b16 %v168
    %v205 = vunpack.c.l.b16 %v169
    %v206 = vunpack.c.l.b16 %v170
    %v207 = vpack.c.b16 %v192, %v191
    %v208 = vpack.c.b16 %v194, %v193
    %v209 = vpack.c.b16 %v196, %v195
    %v210 = vpack.c.b16 %v198, %v197
    %v211 = vpack.c.b16 %v200, %v199
    %v212 = vpack.c.b16 %v202, %v201
    %v213 = vpack.c.b16 %v204, %v203
    %v214 = vpack.c.b16 %v206, %v205
    %223 = vmatpush.bf16.msra.mxu0 %v214
    %224 = vmatpush.bf16.msra.mxu0 %v213
    %225 = vmatpush.bf16.msra.mxu0 %v212
    %226 = vmatpush.bf16.msra.mxu0 %v211
    %227 = vmatpush.bf16.msra.mxu0 %v210
    %228 = vmatpush.bf16.msra.mxu0 %v209
    %229 = vmatpush.bf16.msra.mxu0 %v208
    %230 = vmatpush.bf16.msra.mxu0 %v207
    %231 = vmatmul.bf16.gmra.mxu0 %v154
    %v232 = vpop.f32.mrf.mxu0
    %v233 = vadd.f32 %v173, %v232
    %v234 = vpop.f32.mrf.mxu0
    %235 = vdwg.mxu0
    %v236 = vlaneseq
    %v237 = vand.u32 %v236, 127
    %vm238 = vcmp.lt.s32.totalorder %v237, 4
    %vm239 = vcmp.eq.s32.totalorder %v237, 4
    %v240 = vsel %vm238, %v233, -inf
    %v241 = vsel %vm46, %v240, -inf
    %242 = vmax.xlane.f32.xlu0 %v241
    %v243 = vpop.xlane.xlu0 %242
    %v244 = vsub.f32 %v240, %v243
    %v245 = vmul.f32 %v244, 1.442695
    %v246 = vpow.pop %v245
    %v247 = vsel %vm46, %v246, 0.0
    %248 = vadd.xlane.f32.xlu0 %v247
    %v249 = vpop.xlane.xlu0 %248
    %v250 = vrcp.pop %v249
    %v251 = vmul.f32 %v249, %v250
    %v252 = vsub.f32 1.0, %v251
    %v253 = vmul.f32 %v250, %v252
    %v254 = vadd.f32 %v250, %v253
    %vm255 = vweird.f32 %v249
    %vm256 = vweird.f32 %v250
    %vm257 = vmor %vm255, %vm256
    %v258 = vsel %vm257, %v250, %v254
    %v259 = vand.u32 2147483647, %v249
    %vm260 = vcmp.eq.f32.partialorder %v259, 8.507059e+37
    %v261 = vand.u32 %v249, 2147483648
    %v262 = vor.u32 1.1754944e-38, %v261
    %v263 = vsel %vm260, %v262, %v258
    %v264 = vmul.f32 %v246, %v263
    %v265 = vsel %vm239, %v233, 0.0
    %v266 = vadd.f32 %v264, %v265
    %267 = vst.msk [vmem:[#allocation4] sm:$0xff] %vm46, %v266
    // Predicated region
    $region34: #{actor_critic_forward.1} parent=1 // pred_check
      _
    $region35: #{actor_critic_forward.1} parent=1 // pred_check_branch
      %269 = sbr.rel (0) target = $region37
    $region36: #{actor_critic_forward.1} parent=1 // pred_region
      // Predicated region
      $region38: #{actor_critic_forward.1} parent=36 // pred_check
        _
      $region39: #{actor_critic_forward.1} parent=36 // pred_check_branch
        %271 = sbr.rel (0) target = $region41
      $region40: #{actor_critic_forward.1} parent=36 // pred_region
        // Predicated region
        $region42: #{actor_critic_forward.1} parent=40 // pred_check
          _
        $region43: #{actor_critic_forward.1} parent=40 // pred_check_branch
          %273 = sbr.rel target = $region45
        $region44: #{actor_critic_forward.1} parent=40 // pred_region
          // Predicated region
          $region57: #{actor_critic_forward.1} parent=44 // pred_check
            _
          $region58: #{actor_critic_forward.1} parent=44 // pred_check_branch
            %289 = sbr.rel (0) target = $region60
          $region59: #{actor_critic_forward.1} parent=44 // pred_region
            %s291 = ssub.s32 4, 1
            loop: start=0, step=1, limit=1
            $region61: #{actor_critic_forward.1} parent=59 // loop_pre_header
              _
            $region62: #{actor_critic_forward.1} parent=59 // loop_header
              %s293 = sphi 0, %s297
              %p294 = scmp.ge.s32.totalorder %s293, 1
              %s298 = sphi [#allocation4], [#allocation4]
              %s299 = sphi %s7, %s7
            $region63: #{actor_critic_forward.1} parent=59 // loop_header_branch
              %296 = sbr.rel (%p294) target = $region67
            $region64: #{actor_critic_forward.1} parent=59 // loop_body
              %v300 = vld [vmem:[%s298] sm:%s291]
              %301 = vst [vmem:[%s299] sm:%s291] %v300
            $region65: #{actor_critic_forward.1} parent=59 // loop_footer
              %s297 = sadd.s32 1, %s293
            $region66: #{actor_critic_forward.1} parent=59 // loop_footer_branch
              %292 = sbr.rel target = $region62
            $region67: #{actor_critic_forward.1} parent=59 // loop_exit
              _
          $region60: #{actor_critic_forward.1} parent=44 // pred_fallthru
            _
        $region45: #{actor_critic_forward.1} parent=40 // pred_fallthru
          _
        // Predicated region
        $region46: #{actor_critic_forward.1} parent=40 // pred_check
          _
        $region47: #{actor_critic_forward.1} parent=40 // pred_check_branch
          %275 = sbr.rel (0) target = $region49
        $region48: #{actor_critic_forward.1} parent=40 // pred_region
          %s277 = ssub.s32 4, 1
          loop: start=0, step=1, limit=1
          $region50: #{actor_critic_forward.1} parent=48 // loop_pre_header
            _
          $region51: #{actor_critic_forward.1} parent=48 // loop_header
            %s279 = sphi 0, %s283
            %p280 = scmp.ge.s32.totalorder %s279, 1
            %s284 = sphi [#allocation4], [#allocation4]
            %s285 = sphi %s7, %s7
          $region52: #{actor_critic_forward.1} parent=48 // loop_header_branch
            %282 = sbr.rel (%p280) target = $region56
          $region53: #{actor_critic_forward.1} parent=48 // loop_body
            %v286 = vld [vmem:[%s284] sm:%s277]
            %287 = vst [vmem:[%s285] sm:%s277] %v286
          $region54: #{actor_critic_forward.1} parent=48 // loop_footer
            %s283 = sadd.s32 1, %s279
          $region55: #{actor_critic_forward.1} parent=48 // loop_footer_branch
            %278 = sbr.rel target = $region51
          $region56: #{actor_critic_forward.1} parent=48 // loop_exit
            _
        $region49: #{actor_critic_forward.1} parent=40 // pred_fallthru
          _
      $region41: #{actor_critic_forward.1} parent=36 // pred_fallthru
        _
      %302 = vnop
    $region37: #{actor_critic_forward.1} parent=1 // pred_fallthru
      _
    // Predicated region
    $region68: #{actor_critic_forward.1} parent=1 // pred_check
      _
    $region69: #{actor_critic_forward.1} parent=1 // pred_check_branch
      %304 = sbr.rel (0) target = $region71
    $region70: #{actor_critic_forward.1} parent=1 // pred_region
      _
    $region71: #{actor_critic_forward.1} parent=1 // pred_fallthru
      _
    %305 = vsyncpa [#allocation3], 1

</llo_original>
